<compile_context>
chip_gen: v5e
topology: v5e:2x2
jax: 0.10.0
libtpu: 0.0.40
codegen_flags: <defaults>
</compile_context>

<pallas_src>
import functools

import jax
import jax.numpy as jnp
from jax.experimental import pallas as pl
from jax.experimental.pallas import tpu as pltpu

TILE_E = 512  # lanes per grid step; multiple of 256 (v6e/v7x MXU width), of 128 (v5e)


def _meta1_kernel(inp_ref, p1_ref, p2_ref, p3_ref, out_ref):
    xt = inp_ref[...]                                  # (3, T): [x[row]; x[col]; edge_attr]

    # layer 1: Lin(3,10) (constant-u column already folded into bias) + ReLU
    w1t = p1_ref[:, 0:3]                               # (10, 3)
    b1 = p1_ref[:, 3:4]                                # (10, 1)
    h = jnp.dot(w1t, xt, preferred_element_type=jnp.float32) + b1
    h = jnp.maximum(h, 0.0)                            # (10, T)

    # layer 2: fused Lin(10,19)·fc1(19,10) with eval-mode BatchNorm folded in, + ReLU
    w2t = p2_ref[:, 0:10]                              # (10, 10)
    b2 = p2_ref[:, 10:11]                              # (10, 1)
    z = jnp.dot(w2t, h, preferred_element_type=jnp.float32) + b2
    z = jnp.maximum(z, 0.0)                            # (10, T)

    # layer 3: fc2 (10 -> 1); dropout is identity in eval mode
    w3t = p3_ref[:, 0:10]                              # (1, 10)
    b3 = p3_ref[:, 10:11]                              # (1, 1)
    out_ref[...] = jnp.dot(w3t, z, preferred_element_type=jnp.float32) + b3   # (1, T)


@functools.partial(jax.jit, static_argnames=("tile_e",))
def meta1_forward(x, edge_index, edge_attr, folded_params, tile_e=TILE_E):
    """x: (N,1) f32, edge_index: (2,E) i32, edge_attr: (E,1) f32 -> (E,1) f32."""
    p1, p2, p3 = folded_params
    E = edge_index.shape[1]
    row, col = edge_index[0], edge_index[1]

    # Data-dependent gather + transpose glue in JAX (fused under this jit).
    # u[batch[row]] == 1.0 always, so that column is folded into p1's bias.
    inp_t = jnp.stack([x[row, 0], x[col, 0], edge_attr[:, 0]], axis=0)   # (3, E)

    n_tiles = pl.cdiv(E, tile_e)
    e_pad = n_tiles * tile_e
    inp_t = jnp.pad(inp_t, ((0, 0), (0, e_pad - E)))                     # pad last tile

    out = pl.pallas_call(
        _meta1_kernel,
        out_shape=jax.ShapeDtypeStruct((1, e_pad), jnp.float32),
        grid=(n_tiles,),
        in_specs=[
            pl.BlockSpec((3, tile_e), lambda i: (0, i)),   # edge features, lane-dense
            pl.BlockSpec(p1.shape, lambda i: (0, 0)),      # weights: same block every step
            pl.BlockSpec(p2.shape, lambda i: (0, 0)),
            pl.BlockSpec(p3.shape, lambda i: (0, 0)),
        ],
        out_specs=pl.BlockSpec((1, tile_e), lambda i: (0, i)),
        compiler_params=pltpu.CompilerParams(
            dimension_semantics=("parallel",)),            # shard tiles across v7x's 2 TCs
    )(inp_t, p1, p2, p3)

    return out[0, :E].reshape(E, 1)


def init_params(key):
    """Deterministic synthetic parameters, PyTorch-equivalent layout:
    Linear weights stored (in, out) so x @ W + b matches nn.Linear."""
    ks = jax.random.split(key, 12)
    w1 = jax.random.normal(ks[0], (4, 10), jnp.float32) * 0.3     # edge_mlp Lin(4,10)
    b1 = jax.random.normal(ks[1], (1, 10), jnp.float32) * 0.1
    w2 = jax.random.normal(ks[2], (10, 19), jnp.float32) * 0.3    # edge_mlp Lin(10,19)
    b2 = jax.random.normal(ks[3], (1, 19), jnp.float32) * 0.1
    wf1 = jax.random.normal(ks[4], (19, 10), jnp.float32) * 0.3   # fc1 Lin(19,10)
    bf1 = jax.random.normal(ks[5], (1, 10), jnp.float32) * 0.1
    wf2 = jax.random.normal(ks[6], (10, 1), jnp.float32) * 0.3    # fc2 Lin(10,1)
    bf2 = jax.random.normal(ks[7], (1, 1), jnp.float32) * 0.1
    # BatchNorm1d(10), eval mode -> affine scale/shift from running stats.
    # TODO(synk): training-mode BN (batch statistics) and dropout not implemented; eval semantics only.
    gamma = 1.0 + 0.1 * jax.random.normal(ks[8], (10,), jnp.float32)
    beta = 0.1 * jax.random.normal(ks[9], (10,), jnp.float32)
    rmean = 0.1 * jax.random.normal(ks[10], (10,), jnp.float32)
    rvar = 1.0 + 0.1 * jax.random.uniform(ks[11], (10,), jnp.float32)
    inv_std = 1.0 / jnp.sqrt(rvar + 1e-5)
    bn_scale = (gamma * inv_std).reshape(1, 10)
    bn_shift = (beta - rmean * gamma * inv_std).reshape(1, 10)
    return (w1, b1, w2, b2, wf1, bf1, bn_scale, bn_shift, wf2, bf2)


def fold_params(raw):
    """One-time algebraic folding (changes FP rounding order only):
       constant-u column -> bias, Lin(10,19)·fc1(19,10) -> one (10,10) matmul,
       eval BatchNorm -> fused layer; weights transposed to (out,in) and packed
       with their biases into 3 small operands."""
    w1, b1, w2, b2, wf1, bf1, bn_scale, bn_shift, wf2, bf2 = raw
    w1a = w1[:3, :]                                   # (3, 10) — drop constant-u row
    b1a = b1 + w1[3:4, :]                             # (1, 10)
    wb = (w2 @ wf1) * bn_scale                        # (10, 10)
    bb = (b2 @ wf1 + bf1) * bn_scale + bn_shift       # (1, 10)
    p1 = jnp.concatenate([w1a.T, b1a.T], axis=1)      # (10, 4)  = [W1ᵀ | b1]
    p2 = jnp.concatenate([wb.T, bb.T], axis=1)        # (10, 11) = [W2ᵀ | b2]
    p3 = jnp.concatenate([wf2.T, bf2], axis=1)        # (1, 11)  = [W3ᵀ | b3]
    return p1, p2, p3


def reference_forward(x, edge_index, edge_attr, raw):
    """Pure-JAX reference of the ORIGINAL (unfused) math."""
    w1, b1, w2, b2, wf1, bf1, bn_scale, bn_shift, wf2, bf2 = raw
    row, col = edge_index[0], edge_index[1]
    ones = jnp.ones((edge_index.shape[1], 1), jnp.float32)   # u[batch[row]]
    inp = jnp.concatenate([x[row], x[col], edge_attr, ones], axis=1)
    h = jnp.maximum(inp @ w1 + b1, 0.0)
    e = h @ w2 + b2
    z = jnp.maximum((e @ wf1 + bf1) * bn_scale + bn_shift, 0.0)
    return z @ wf2 + bf2


if __name__ == "__main__":
    key = jax.random.PRNGKey(0)
    k_x, k_e, k_idx, k_p = jax.random.split(key, 4)

    raw = init_params(k_p)
    params = fold_params(raw)

    # Small case matching the model defaults (5 nodes, 6 edges) — single grid tile.
    num_nodes, num_edges = 5, 6
    x = jax.random.normal(k_x, (num_nodes, 1), jnp.float32)
    edge_attr = jax.random.normal(k_e, (num_edges, 1), jnp.float32)
    edge_index = jnp.array([[0, 1, 2, 3, 4, 0],
                            [1, 2, 3, 4, 0, 2]], dtype=jnp.int32)

    y = meta1_forward(x, edge_index, edge_attr, params)
    jax.block_until_ready(y)
    ref = reference_forward(x, edge_index, edge_attr, raw)
    assert y.shape == (num_edges, 1)
    assert jnp.allclose(y, ref, atol=1e-4, rtol=1e-4), (y, ref)

    # Larger case exercising multiple grid tiles + padded last tile.
    n2, e2 = 64, 1300
    x2 = jax.random.normal(jax.random.fold_in(k_x, 1), (n2, 1), jnp.float32)
    ea2 = jax.random.normal(jax.random.fold_in(k_e, 1), (e2, 1), jnp.float32)
    ei2 = jax.random.randint(k_idx, (2, e2), 0, n2, dtype=jnp.int32)
    y2 = meta1_forward(x2, ei2, ea2, params)
    jax.block_until_ready(y2)
    ref2 = reference_forward(x2, ei2, ea2, raw)
    assert y2.shape == (e2, 1)
    assert jnp.allclose(y2, ref2, atol=1e-4, rtol=1e-4), float(jnp.max(jnp.abs(y2 - ref2)))

    print("KERNEL_OK")
</pallas_src>

<mosaic_0001>
module attributes {stable_mosaic.version = 11 : i64} {
  func.func @_meta1_kernel(%arg0: i32, %arg1: memref<3x512xf32, #tpu.memory_space<vmem>>, %arg2: memref<10x4xf32, #tpu.memory_space<vmem>>, %arg3: memref<10x11xf32, #tpu.memory_space<vmem>>, %arg4: memref<1x11xf32, #tpu.memory_space<vmem>>, %arg5: memref<1x512xf32, #tpu.memory_space<vmem>>) attributes {dimension_semantics = [#tpu.dimension_semantics<parallel>], iteration_bounds = array<i64: 1>, scalar_prefetch = 0 : i64, scratch_operands = 0 : i64, tpu.core_type = #tpu.core_type<tc>, window_params = [{transform_indices = @transform_0, window_bounds = array<i64: 3, 512>}, {pipeline_mode = #tpu.pipeline_mode<synchronous>, transform_indices = @transform_1, window_bounds = array<i64: 10, 4>}, {pipeline_mode = #tpu.pipeline_mode<synchronous>, transform_indices = @transform_2, window_bounds = array<i64: 10, 11>}, {pipeline_mode = #tpu.pipeline_mode<synchronous>, transform_indices = @transform_3, window_bounds = array<i64: 1, 11>}, {transform_indices = @transform_4, window_bounds = array<i64: 1, 512>}]} {
    %c0 = arith.constant 0 : index
    %c0_0 = arith.constant 0 : index
    %0 = vector.load %arg1[%c0, %c0_0] : memref<3x512xf32, #tpu.memory_space<vmem>>, vector<3x512xf32>
    %c0_1 = arith.constant 0 : index
    %c0_2 = arith.constant 0 : index
    %1 = vector.load %arg2[%c0_1, %c0_2] : memref<10x4xf32, #tpu.memory_space<vmem>>, vector<10x3xf32>
    %c0_3 = arith.constant 0 : index
    %c3 = arith.constant 3 : index
    %2 = vector.load %arg2[%c0_3, %c3] : memref<10x4xf32, #tpu.memory_space<vmem>>, vector<10x1xf32>
    %cst = arith.constant dense<0.000000e+00> : vector<10x512xf32>
    %3 = tpu.matmul %1, %0, %cst {dimension_numbers = #tpu.dot_dimension_numbers<[1], [0], [0], [1], [0, 0, 1, 1], [], []>} : vector<10x3xf32>, vector<3x512xf32>, vector<10x512xf32> -> vector<10x512xf32>
    %4 = vector.broadcast %2 : vector<10x1xf32> to vector<10x512xf32>
    %5 = arith.addf %3, %4 : vector<10x512xf32>
    %cst_4 = arith.constant 0.000000e+00 : f32
    %6 = vector.broadcast %cst_4 : f32 to vector<10x512xf32>
    %7 = arith.maximumf %5, %6 : vector<10x512xf32>
    %c0_5 = arith.constant 0 : index
    %c0_6 = arith.constant 0 : index
    %8 = vector.load %arg3[%c0_5, %c0_6] : memref<10x11xf32, #tpu.memory_space<vmem>>, vector<10x10xf32>
    %c0_7 = arith.constant 0 : index
    %c10 = arith.constant 10 : index
    %9 = vector.load %arg3[%c0_7, %c10] : memref<10x11xf32, #tpu.memory_space<vmem>>, vector<10x1xf32>
    %cst_8 = arith.constant dense<0.000000e+00> : vector<10x512xf32>
    %10 = tpu.matmul %8, %7, %cst_8 {dimension_numbers = #tpu.dot_dimension_numbers<[1], [0], [0], [1], [0, 0, 1, 1], [], []>} : vector<10x10xf32>, vector<10x512xf32>, vector<10x512xf32> -> vector<10x512xf32>
    %11 = vector.broadcast %9 : vector<10x1xf32> to vector<10x512xf32>
    %12 = arith.addf %10, %11 : vector<10x512xf32>
    %cst_9 = arith.constant 0.000000e+00 : f32
    %13 = vector.broadcast %cst_9 : f32 to vector<10x512xf32>
    %14 = arith.maximumf %12, %13 : vector<10x512xf32>
    %c0_10 = arith.constant 0 : index
    %c0_11 = arith.constant 0 : index
    %15 = vector.load %arg4[%c0_10, %c0_11] : memref<1x11xf32, #tpu.memory_space<vmem>>, vector<1x10xf32>
    %c0_12 = arith.constant 0 : index
    %c10_13 = arith.constant 10 : index
    %16 = vector.load %arg4[%c0_12, %c10_13] : memref<1x11xf32, #tpu.memory_space<vmem>>, vector<1x1xf32>
    %cst_14 = arith.constant dense<0.000000e+00> : vector<1x512xf32>
    %17 = tpu.matmul %15, %14, %cst_14 {dimension_numbers = #tpu.dot_dimension_numbers<[1], [0], [0], [1], [0, 0, 1, 1], [], []>} : vector<1x10xf32>, vector<10x512xf32>, vector<1x512xf32> -> vector<1x512xf32>
    %18 = vector.broadcast %16 : vector<1x1xf32> to vector<1x512xf32>
    %19 = arith.addf %17, %18 : vector<1x512xf32>
    %c0_15 = arith.constant 0 : index
    %c0_16 = arith.constant 0 : index
    %20 = vector.load %arg5[%c0_15, %c0_16] : memref<1x512xf32, #tpu.memory_space<vmem>>, vector<1x512xf32>
    tpu.vector_store %arg5[%c0_15, %c0_16], %19 {strides = array<i32>} : memref<1x512xf32, #tpu.memory_space<vmem>>, vector<1x512xf32>,
    return
  }
  func.func @transform_0(%arg0: i32) -> (i32, i32) {
    %c0_i32 = arith.constant 0 : i32
    %c0_i32_0 = arith.constant 0 : i32
    return %c0_i32, %arg0 : i32, i32
  }
  func.func @transform_1(%arg0: i32) -> (i32, i32) {
    %c0_i32 = arith.constant 0 : i32
    %c0_i32_0 = arith.constant 0 : i32
    %c0_i32_1 = arith.constant 0 : i32
    return %c0_i32, %c0_i32_0 : i32, i32
  }
  func.func @transform_2(%arg0: i32) -> (i32, i32) {
    %c0_i32 = arith.constant 0 : i32
    %c0_i32_0 = arith.constant 0 : i32
    %c0_i32_1 = arith.constant 0 : i32
    return %c0_i32, %c0_i32_0 : i32, i32
  }
  func.func @transform_3(%arg0: i32) -> (i32, i32) {
    %c0_i32 = arith.constant 0 : i32
    %c0_i32_0 = arith.constant 0 : i32
    %c0_i32_1 = arith.constant 0 : i32
    return %c0_i32, %c0_i32_0 : i32, i32
  }
  func.func @transform_4(%arg0: i32) -> (i32, i32) {
    %c0_i32 = arith.constant 0 : i32
    %c0_i32_0 = arith.constant 0 : i32
    return %c0_i32, %arg0 : i32, i32
  }
}

</mosaic_0001>

<llo_original>
// kernel: meta1_forward.1
$region0: #{meta1_forward.1}
  #allocation0 [shape = 'u32[]', space=smem, size = 0x4, offset = 0x4, fixed_abs, tag = 'smem constant byte address 0x4 - core index']
  #allocation1 [shape = 'u32[72,128]{1,0:T(1,128)}', space=vmem, size = 0x9000, scoped, tag = 'internal scratch']
  %s0 = inlined_call_operand.vmem [shape: f32[3,512], index: 0, kind: input, shape index: {}]
  %s1 = inlined_call_operand.vmem [shape: f32[10,4], index: 1, kind: input, shape index: {}]
  %s2 = inlined_call_operand.vmem [shape: f32[10,11], index: 2, kind: input, shape index: {}]
  %s3 = inlined_call_operand.vmem [shape: f32[1,11], index: 3, kind: input, shape index: {}]
  %s4 = inlined_call_operand.vmem [shape: f32[1,512], index: 4, kind: output, shape index: {}]
  %s5 = sld [smem:[#allocation0]]
  $region26: #{meta1_forward.1} parent=0
    _
  %s7 = ssub.s32 1, %s5
  %s8 = scalar_select 0, %s7, %s5
  // Predicated region
  $region2: #{meta1_forward.1} parent=0 // pred_check
    _
  $region3: #{meta1_forward.1} parent=0 // pred_check_branch
    %10 = sbr.rel (0) target = $region5
  $region4: #{meta1_forward.1} parent=0 // pred_region
    _
  $region5: #{meta1_forward.1} parent=0 // pred_fallthru
    _
  // Predicated region
  $region6: #{meta1_forward.1} parent=0 // pred_check
    _
  $region7: #{meta1_forward.1} parent=0 // pred_check_branch
    %12 = sbr.rel (0) target = $region9
  $region8: #{meta1_forward.1} parent=0 // pred_region
    _
  $region9: #{meta1_forward.1} parent=0 // pred_fallthru
    _
  // Predicated region
  $region10: #{meta1_forward.1} parent=0 // pred_check
    _
  $region11: #{meta1_forward.1} parent=0 // pred_check_branch
    %14 = sbr.rel (0) target = $region13
  $region12: #{meta1_forward.1} parent=0 // pred_region
    _
  $region13: #{meta1_forward.1} parent=0 // pred_fallthru
    _
  // Predicated region
  $region14: #{meta1_forward.1} parent=0 // pred_check
    _
  $region15: #{meta1_forward.1} parent=0 // pred_check_branch
    %16 = sbr.rel (0) target = $region17
  $region16: #{meta1_forward.1} parent=0 // pred_region
    _
  $region17: #{meta1_forward.1} parent=0 // pred_fallthru
    _
  %v17 = vld [vmem:[%s0] sm:$0x77]
  %v18 = vld [vmem:[%s0 + $0x8] sm:$0x77]
  %v19 = vld [vmem:[%s1] sm:$0xff]
  %v20 = vld [vmem:[%s1 + $0x8] sm:$0x3]
  %22 = vset.pattern.permute.xlu0 3
  %23 = vperm.xlu0 %22, %v19
  %v24 = vpop.permute.xlu0 %23
  %27 = vset.pattern.permute.xlu0 3
  %28 = vperm.xlu0 %27, %v20
  %v29 = vpop.permute.xlu0 %28
  %33 = vst [vmem:[#allocation1] ss:$2 sm:$0xff] %v17
  %s34 = scalar_lea.vmem [#allocation1], 16
  %35 = vst [vmem:[%s34] ss:$2 sm:$0xff] %v18
  %v36 = vld.sshfl [vmem:[#allocation1] sm:$0xff pattern:$0x75316420]
  %v37 = vld.sshfl [vmem:[#allocation1 + $0x8] sm:$0xff pattern:$0x75316420]
  %v38 = vld.sshfl [vmem:[#allocation1 + $0x10] sm:$0xff pattern:$0x75316420]
  %v39 = vld.sshfl [vmem:[#allocation1 + $0x18] sm:$0xff pattern:$0x75316420]
  %vm40 = vcmask 23552
  %v41 = vsel %vm40, %v19, 0
  %v43 = vsel %vm40, %v20, 0
  %vm45 = vcmask 1042432
  %v46 = vsel %vm45, %v36, 0
  %v48 = vsel %vm45, %v37, 0
  %v50 = vsel %vm45, %v38, 0
  %v52 = vsel %vm45, %v39, 0
  %54 = vmatpush.msra.mxu0 0.0
  %55 = vmatpush.msra.mxu0 0.0
  %56 = vmatpush.msra.mxu0 0.0
  %57 = vmatpush.msra.mxu0 0.0
  %58 = vmatpush.msra.mxu0 0.0
  %59 = vmatpush.msra.mxu0 0.0
  %60 = vmatpush.msra.mxu0 0.0
  %61 = vmatpush.msra.mxu0 0.0
  %62 = vmatpush.msra.mxu0 0.0
  %63 = vmatpush.msra.mxu0 0.0
  %64 = vmatpush.msra.mxu0 0.0
  %65 = vmatpush.msra.mxu0 0.0
  %66 = vmatpush.msra.mxu0 0.0
  %67 = vmatpush.msra.mxu0 0.0
  %68 = vmatpush.msra.mxu0 0.0
  %69 = vmatpush.msra.mxu0 %v46
  %70 = vmatmul.f32.gmra.mxu0 %v41
  %v71 = vpop.f32.mrf.mxu0
  %v72 = vadd.f32 %v24, %v71
  %73 = vmatmul.f32.gmra.mxu0 %v43
  %v74 = vpop.f32.mrf.mxu0
  %v75 = vadd.f32 %v29, %v74
  %76 = vdwg.mxu0
  %77 = vmatpush.msra.mxu0 0.0
  %78 = vmatpush.msra.mxu0 0.0
  %79 = vmatpush.msra.mxu0 0.0
  %80 = vmatpush.msra.mxu0 0.0
  %81 = vmatpush.msra.mxu0 0.0
  %82 = vmatpush.msra.mxu0 0.0
  %83 = vmatpush.msra.mxu0 0.0
  %84 = vmatpush.msra.mxu0 0.0
  %85 = vmatpush.msra.mxu0 0.0
  %86 = vmatpush.msra.mxu0 0.0
  %87 = vmatpush.msra.mxu0 0.0
  %88 = vmatpush.msra.mxu0 0.0
  %89 = vmatpush.msra.mxu0 0.0
  %90 = vmatpush.msra.mxu0 0.0
  %91 = vmatpush.msra.mxu0 0.0
  %92 = vmatpush.msra.mxu0 %v48
  %93 = vmatmul.f32.gmra.mxu0 %v41
  %v94 = vpop.f32.mrf.mxu0
  %v95 = vadd.f32 %v24, %v94
  %96 = vmatmul.f32.gmra.mxu0 %v43
  %v97 = vpop.f32.mrf.mxu0
  %v98 = vadd.f32 %v29, %v97
  %99 = vdwg.mxu0
  %100 = vmatpush.msra.mxu0 0.0
  %101 = vmatpush.msra.mxu0 0.0
  %102 = vmatpush.msra.mxu0 0.0
  %103 = vmatpush.msra.mxu0 0.0
  %104 = vmatpush.msra.mxu0 0.0
  %105 = vmatpush.msra.mxu0 0.0
  %106 = vmatpush.msra.mxu0 0.0
  %107 = vmatpush.msra.mxu0 0.0
  %108 = vmatpush.msra.mxu0 0.0
  %109 = vmatpush.msra.mxu0 0.0
  %110 = vmatpush.msra.mxu0 0.0
  %111 = vmatpush.msra.mxu0 0.0
  %112 = vmatpush.msra.mxu0 0.0
  %113 = vmatpush.msra.mxu0 0.0
  %114 = vmatpush.msra.mxu0 0.0
  %115 = vmatpush.msra.mxu0 %v50
  %116 = vmatmul.f32.gmra.mxu0 %v41
  %v117 = vpop.f32.mrf.mxu0
  %v118 = vadd.f32 %v24, %v117
  %119 = vmatmul.f32.gmra.mxu0 %v43
  %v120 = vpop.f32.mrf.mxu0
  %v121 = vadd.f32 %v29, %v120
  %122 = vdwg.mxu0
  %123 = vmatpush.msra.mxu0 0.0
  %124 = vmatpush.msra.mxu0 0.0
  %125 = vmatpush.msra.mxu0 0.0
  %126 = vmatpush.msra.mxu0 0.0
  %127 = vmatpush.msra.mxu0 0.0
  %128 = vmatpush.msra.mxu0 0.0
  %129 = vmatpush.msra.mxu0 0.0
  %130 = vmatpush.msra.mxu0 0.0
  %131 = vmatpush.msra.mxu0 0.0
  %132 = vmatpush.msra.mxu0 0.0
  %133 = vmatpush.msra.mxu0 0.0
  %134 = vmatpush.msra.mxu0 0.0
  %135 = vmatpush.msra.mxu0 0.0
  %136 = vmatpush.msra.mxu0 0.0
  %137 = vmatpush.msra.mxu0 0.0
  %138 = vmatpush.msra.mxu0 %v52
  %139 = vmatmul.f32.gmra.mxu0 %v41
  %v140 = vpop.f32.mrf.mxu0
  %v141 = vadd.f32 %v24, %v140
  %142 = vmatmul.f32.gmra.mxu0 %v43
  %v143 = vpop.f32.mrf.mxu0
  %v144 = vadd.f32 %v29, %v143
  %145 = vdwg.mxu0
  %v146 = vmax.f32 %v72, 0.0
  %v147 = vmax.f32 %v95, 0.0
  %v148 = vmax.f32 %v118, 0.0
  %v149 = vmax.f32 %v141, 0.0
  %v150 = vmax.f32 %v75, 0.0
  %v151 = vmax.f32 %v98, 0.0
  %v152 = vmax.f32 %v121, 0.0
  %v153 = vmax.f32 %v144, 0.0
  %v154 = vld [vmem:[%s2] sm:$0xff]
  %v155 = vld [vmem:[%s2 + $0x8] sm:$0x3]
  %157 = vset.pattern.permute.xlu0 10
  %158 = vperm.xlu0 %157, %v154
  %v159 = vpop.permute.xlu0 %158
  %162 = vset.pattern.permute.xlu0 10
  %163 = vperm.xlu0 %162, %v155
  %v164 = vpop.permute.xlu0 %163
  %vm166 = vcmask 80896
  %v167 = vsel %vm166, %v154, 0
  %v169 = vsel %vm166, %v155, 0
  %vm171 = vcmask 1041408
  %v173 = vsel %vm171, %v150, 0
  %v176 = vsel %vm171, %v151, 0
  %v179 = vsel %vm171, %v152, 0
  %v182 = vsel %vm171, %v153, 0
  %184 = vmatpush.msra.mxu0 0.0
  %185 = vmatpush.msra.mxu0 0.0
  %186 = vmatpush.msra.mxu0 0.0
  %187 = vmatpush.msra.mxu0 0.0
  %188 = vmatpush.msra.mxu0 0.0
  %189 = vmatpush.msra.mxu0 0.0
  %190 = vmatpush.msra.mxu0 0.0
  %191 = vmatpush.msra.mxu0 0.0
  %192 = vmatpush.msra.mxu0 0.0
  %193 = vmatpush.msra.mxu0 0.0
  %194 = vmatpush.msra.mxu0 0.0
  %195 = vmatpush.msra.mxu0 0.0
  %196 = vmatpush.msra.mxu0 0.0
  %197 = vmatpush.msra.mxu0 0.0
  %198 = vmatpush.msra.mxu0 %v173
  %199 = vmatpush.msra.mxu0 %v146
  %200 = vmatmul.f32.gmra.mxu0 %v167
  %v201 = vpop.f32.mrf.mxu0
  %v202 = vadd.f32 %v159, %v201
  %203 = vmatmul.f32.gmra.mxu0 %v169
  %v204 = vpop.f32.mrf.mxu0
  %v205 = vadd.f32 %v164, %v204
  %206 = vdwg.mxu0
  %207 = vmatpush.msra.mxu0 0.0
  %208 = vmatpush.msra.mxu0 0.0
  %209 = vmatpush.msra.mxu0 0.0
  %210 = vmatpush.msra.mxu0 0.0
  %211 = vmatpush.msra.mxu0 0.0
  %212 = vmatpush.msra.mxu0 0.0
  %213 = vmatpush.msra.mxu0 0.0
  %214 = vmatpush.msra.mxu0 0.0
  %215 = vmatpush.msra.mxu0 0.0
  %216 = vmatpush.msra.mxu0 0.0
  %217 = vmatpush.msra.mxu0 0.0
  %218 = vmatpush.msra.mxu0 0.0
  %219 = vmatpush.msra.mxu0 0.0
  %220 = vmatpush.msra.mxu0 0.0
  %221 = vmatpush.msra.mxu0 %v176
  %222 = vmatpush.msra.mxu0 %v147
  %223 = vmatmul.f32.gmra.mxu0 %v167
  %v224 = vpop.f32.mrf.mxu0
  %v225 = vadd.f32 %v159, %v224
  %226 = vmatmul.f32.gmra.mxu0 %v169
  %v227 = vpop.f32.mrf.mxu0
  %v228 = vadd.f32 %v164, %v227
  %229 = vdwg.mxu0
  %230 = vmatpush.msra.mxu0 0.0
  %231 = vmatpush.msra.mxu0 0.0
  %232 = vmatpush.msra.mxu0 0.0
  %233 = vmatpush.msra.mxu0 0.0
  %234 = vmatpush.msra.mxu0 0.0
  %235 = vmatpush.msra.mxu0 0.0
  %236 = vmatpush.msra.mxu0 0.0
  %237 = vmatpush.msra.mxu0 0.0
  %238 = vmatpush.msra.mxu0 0.0
  %239 = vmatpush.msra.mxu0 0.0
  %240 = vmatpush.msra.mxu0 0.0
  %241 = vmatpush.msra.mxu0 0.0
  %242 = vmatpush.msra.mxu0 0.0
  %243 = vmatpush.msra.mxu0 0.0
  %244 = vmatpush.msra.mxu0 %v179
  %245 = vmatpush.msra.mxu0 %v148
  %246 = vmatmul.f32.gmra.mxu0 %v167
  %v247 = vpop.f32.mrf.mxu0
  %v248 = vadd.f32 %v159, %v247
  %249 = vmatmul.f32.gmra.mxu0 %v169
  %v250 = vpop.f32.mrf.mxu0
  %v251 = vadd.f32 %v164, %v250
  %252 = vdwg.mxu0
  %253 = vmatpush.msra.mxu0 0.0
  %254 = vmatpush.msra.mxu0 0.0
  %255 = vmatpush.msra.mxu0 0.0
  %256 = vmatpush.msra.mxu0 0.0
  %257 = vmatpush.msra.mxu0 0.0
  %258 = vmatpush.msra.mxu0 0.0
  %259 = vmatpush.msra.mxu0 0.0
  %260 = vmatpush.msra.mxu0 0.0
  %261 = vmatpush.msra.mxu0 0.0
  %262 = vmatpush.msra.mxu0 0.0
  %263 = vmatpush.msra.mxu0 0.0
  %264 = vmatpush.msra.mxu0 0.0
  %265 = vmatpush.msra.mxu0 0.0
  %266 = vmatpush.msra.mxu0 0.0
  %267 = vmatpush.msra.mxu0 %v182
  %268 = vmatpush.msra.mxu0 %v149
  %269 = vmatmul.f32.gmra.mxu0 %v167
  %v270 = vpop.f32.mrf.mxu0
  %v271 = vadd.f32 %v159, %v270
  %272 = vmatmul.f32.gmra.mxu0 %v169
  %v273 = vpop.f32.mrf.mxu0
  %v274 = vadd.f32 %v164, %v273
  %275 = vdwg.mxu0
  %v276 = vmax.f32 %v202, 0.0
  %v277 = vmax.f32 %v225, 0.0
  %v278 = vmax.f32 %v248, 0.0
  %v279 = vmax.f32 %v271, 0.0
  %v280 = vmax.f32 %v205, 0.0
  %v281 = vmax.f32 %v228, 0.0
  %v282 = vmax.f32 %v251, 0.0
  %v283 = vmax.f32 %v274, 0.0
  %v284 = vld [vmem:[%s3] sm:$0x1]
  %286 = vset.pattern.permute.xlu0 10
  %287 = vperm.xlu0 %286, %v284
  %v288 = vpop.permute.xlu0 %287
  %v290 = vperm.slane %v288, 0
  %v291 = vsel %vm166, %v284, 0
  %v294 = vsel %vm171, %v280, 0
  %v297 = vsel %vm171, %v281, 0
  %v300 = vsel %vm171, %v282, 0
  %v303 = vsel %vm171, %v283, 0
  %305 = vmatpush.msra.mxu0 0.0
  %306 = vmatpush.msra.mxu0 0.0
  %307 = vmatpush.msra.mxu0 0.0
  %308 = vmatpush.msra.mxu0 0.0
  %309 = vmatpush.msra.mxu0 0.0
  %310 = vmatpush.msra.mxu0 0.0
  %311 = vmatpush.msra.mxu0 0.0
  %312 = vmatpush.msra.mxu0 0.0
  %313 = vmatpush.msra.mxu0 0.0
  %314 = vmatpush.msra.mxu0 0.0
  %315 = vmatpush.msra.mxu0 0.0
  %316 = vmatpush.msra.mxu0 0.0
  %317 = vmatpush.msra.mxu0 0.0
  %318 = vmatpush.msra.mxu0 0.0
  %319 = vmatpush.msra.mxu0 %v294
  %320 = vmatpush.msra.mxu0 %v276
  %321 = vmatmul.f32.gmra.mxu0 %v291
  %v322 = vpop.f32.mrf.mxu0
  %v323 = vadd.f32 %v290, %v322
  %324 = vdwg.mxu0
  %325 = vmatpush.msra.mxu0 0.0
  %326 = vmatpush.msra.mxu0 0.0
  %327 = vmatpush.msra.mxu0 0.0
  %328 = vmatpush.msra.mxu0 0.0
  %329 = vmatpush.msra.mxu0 0.0
  %330 = vmatpush.msra.mxu0 0.0
  %331 = vmatpush.msra.mxu0 0.0
  %332 = vmatpush.msra.mxu0 0.0
  %333 = vmatpush.msra.mxu0 0.0
  %334 = vmatpush.msra.mxu0 0.0
  %335 = vmatpush.msra.mxu0 0.0
  %336 = vmatpush.msra.mxu0 0.0
  %337 = vmatpush.msra.mxu0 0.0
  %338 = vmatpush.msra.mxu0 0.0
  %339 = vmatpush.msra.mxu0 %v297
  %340 = vmatpush.msra.mxu0 %v277
  %341 = vmatmul.f32.gmra.mxu0 %v291
  %v342 = vpop.f32.mrf.mxu0
  %v343 = vadd.f32 %v290, %v342
  %344 = vdwg.mxu0
  %345 = vmatpush.msra.mxu0 0.0
  %346 = vmatpush.msra.mxu0 0.0
  %347 = vmatpush.msra.mxu0 0.0
  %348 = vmatpush.msra.mxu0 0.0
  %349 = vmatpush.msra.mxu0 0.0
  %350 = vmatpush.msra.mxu0 0.0
  %351 = vmatpush.msra.mxu0 0.0
  %352 = vmatpush.msra.mxu0 0.0
  %353 = vmatpush.msra.mxu0 0.0
  %354 = vmatpush.msra.mxu0 0.0
  %355 = vmatpush.msra.mxu0 0.0
  %356 = vmatpush.msra.mxu0 0.0
  %357 = vmatpush.msra.mxu0 0.0
  %358 = vmatpush.msra.mxu0 0.0
  %359 = vmatpush.msra.mxu0 %v300
  %360 = vmatpush.msra.mxu0 %v278
  %361 = vmatmul.f32.gmra.mxu0 %v291
  %v362 = vpop.f32.mrf.mxu0
  %v363 = vadd.f32 %v290, %v362
  %364 = vdwg.mxu0
  %365 = vmatpush.msra.mxu0 0.0
  %366 = vmatpush.msra.mxu0 0.0
  %367 = vmatpush.msra.mxu0 0.0
  %368 = vmatpush.msra.mxu0 0.0
  %369 = vmatpush.msra.mxu0 0.0
  %370 = vmatpush.msra.mxu0 0.0
  %371 = vmatpush.msra.mxu0 0.0
  %372 = vmatpush.msra.mxu0 0.0
  %373 = vmatpush.msra.mxu0 0.0
  %374 = vmatpush.msra.mxu0 0.0
  %375 = vmatpush.msra.mxu0 0.0
  %376 = vmatpush.msra.mxu0 0.0
  %377 = vmatpush.msra.mxu0 0.0
  %378 = vmatpush.msra.mxu0 0.0
  %379 = vmatpush.msra.mxu0 %v303
  %380 = vmatpush.msra.mxu0 %v279
  %381 = vmatmul.f32.gmra.mxu0 %v291
  %v382 = vpop.f32.mrf.mxu0
  %v383 = vadd.f32 %v290, %v382
  %384 = vdwg.mxu0
  %v389 = vrot.slane %v343, 7
  %v390 = vrot.slane %v363, 6
  %v391 = vrot.slane %v383, 5
  %vm392 = vcmask 1040384
  %v393 = vsel %vm392, %v323, %v389
  %vm394 = vcmask 1042434
  %v395 = vsel %vm394, %v390, %v391
  %v396 = vsel %vm171, %v393, %v395
  %v398 = vlaneseq
  %vm399 = vcmp.ge.s32.totalorder %v398, 0
  %vm400 = vcmp.lt.s32.totalorder %v398, 512
  %vm401 = vmand %vm399, %vm400
  %402 = vst.msk [vmem:[%s4] sm:$0xf] %vm401, %v396
  // Predicated region
  $region18: #{meta1_forward.1} parent=0 // pred_check
    _
  $region19: #{meta1_forward.1} parent=0 // pred_check_branch
    %404 = sbr.rel (0) target = $region21
  $region20: #{meta1_forward.1} parent=0 // pred_region
    _
  $region21: #{meta1_forward.1} parent=0 // pred_fallthru
    _
  // Predicated region
  $region22: #{meta1_forward.1} parent=0 // pred_check
    _
  $region23: #{meta1_forward.1} parent=0 // pred_check_branch
    %406 = sbr.rel (0) target = $region25
  $region24: #{meta1_forward.1} parent=0 // pred_region
    _
  $region25: #{meta1_forward.1} parent=0 // pred_fallthru
    _

</llo_original>
